<compile_context>
chip_gen: v7x
topology: tpu7x:2x2x1
jax: 0.10.0
libtpu: 0.0.40
codegen_flags: <defaults>
</compile_context>

<pallas_src>
import jax
import jax.numpy as jnp
from jax.experimental import pallas as pl
from jax.experimental.pallas import tpu as pltpu


def _sage_classifier_kernel(x_ref, a_ref, p_ref,
                            w1_ref, w23_ref, b_ref,
                            wfc_ref, bfc_ref,
                            out_ref):
    a = a_ref[...]  # (N, N) bf16 row-normalized adjacency

    def sage(h, w_cat, b):
        # Mean-aggregate neighbors: bf16 x bf16 matmul, f32 accumulation.
        agg = jnp.dot(a, h.astype(jnp.bfloat16),
                      preferred_element_type=jnp.float32)
        # Fused lin_l + lin_r: single matmul on concatenated features.
        cat = jnp.concatenate([agg, h], axis=-1)          # (N, 2C) f32
        out = jnp.dot(cat, w_cat, preferred_element_type=jnp.float32) + b
        return jnp.maximum(out, 0.0)                      # ReLU

    h = sage(x_ref[...], w1_ref[...], b_ref[0])           # layer 1
    h = sage(h, w23_ref[0], b_ref[1])                     # layer 2
    h = sage(h, w23_ref[1], b_ref[2])                     # layer 3

    # global_mean_pool + fc (output is lane-padded to 128; sliced in wrapper).
    pooled = jnp.dot(p_ref[...], h, preferred_element_type=jnp.float32)
    out_ref[...] = (jnp.dot(pooled, wfc_ref[...],
                            preferred_element_type=jnp.float32)
                    + bfc_ref[...])


def _full_spec(shape):
    n = len(shape)
    return pl.BlockSpec(shape, lambda i, n=n: (0,) * n)


def graphsage_classifier(x, adj_norm, pool_mat, params, *,
                         vmem_limit_bytes=None):
    """Fused GraphSAGE classifier forward.

    x        : (N, C_in) f32
    adj_norm : (N, N)    f32 row-normalized adjacency (cast to bf16 here)
    pool_mat : (G, N)    f32 mean-pool matrix
    params   : dict (see _init_params)
    returns  : (G, C_out) f32 logits
    """
    g = pool_mat.shape[0]
    c_out = params["wfc"].shape[1]

    # --- pack weights: one fused (2C, H) weight per layer --------------------
    w1 = jnp.concatenate([params["wl1"], params["wr1"]], axis=0)   # (2*C_in, H)
    w23 = jnp.stack([
        jnp.concatenate([params["wl2"], params["wr2"]], axis=0),
        jnp.concatenate([params["wl3"], params["wr3"]], axis=0),
    ])                                                             # (2, 2H, H)
    b = jnp.stack([params["b1"], params["b2"], params["b3"]])      # (3, 1, H)

    # --- lane-dense fc output: pad out-dim to a multiple of 128 --------------
    c_pad = max(128, ((c_out + 127) // 128) * 128)
    wfc = jnp.pad(params["wfc"], ((0, 0), (0, c_pad - c_out)))
    bfc = jnp.pad(params["bfc"], ((0, 0), (0, c_pad - c_out)))

    # --- bf16 adjacency so the dominant O(N^2) DMA is half-width -------------
    adj_bf16 = adj_norm.astype(jnp.bfloat16)

    inputs = (x, adj_bf16, pool_mat, w1, w23, b, wfc, bfc)

    cp_kwargs = dict(dimension_semantics=("arbitrary",))
    if vmem_limit_bytes is not None:
        cp_kwargs["vmem_limit_bytes"] = vmem_limit_bytes

    out_padded = pl.pallas_call(
        _sage_classifier_kernel,
        grid=(1,),
        in_specs=[_full_spec(a.shape) for a in inputs],
        out_specs=_full_spec((g, c_pad)),
        out_shape=jax.ShapeDtypeStruct((g, c_pad), jnp.float32),
        compiler_params=pltpu.CompilerParams(**cp_kwargs),
    )(*inputs)
    return out_padded[:, :c_out]


def _init_params(key, in_channels, hidden_channels, out_channels):
    """Deterministic glorot-uniform-ish init. Weights stored as (in, out)."""
    def lin(k, fan_in, fan_out):
        bound = (6.0 / (fan_in + fan_out)) ** 0.5
        return jax.random.uniform(k, (fan_in, fan_out), jnp.float32,
                                  -bound, bound)

    ks = jax.random.split(key, 8)
    return {
        # SAGEConv 1
        "wl1": lin(ks[0], in_channels, hidden_channels),
        "wr1": lin(ks[1], in_channels, hidden_channels),
        "b1": jnp.zeros((1, hidden_channels), jnp.float32),
        # SAGEConv 2
        "wl2": lin(ks[2], hidden_channels, hidden_channels),
        "wr2": lin(ks[3], hidden_channels, hidden_channels),
        "b2": jnp.zeros((1, hidden_channels), jnp.float32),
        # SAGEConv 3
        "wl3": lin(ks[4], hidden_channels, hidden_channels),
        "wr3": lin(ks[5], hidden_channels, hidden_channels),
        "b3": jnp.zeros((1, hidden_channels), jnp.float32),
        # fc
        "wfc": lin(ks[6], hidden_channels, out_channels),
        "bfc": jax.random.uniform(ks[7], (1, out_channels), jnp.float32,
                                  -0.1, 0.1),
    }


def _build_dense_graph(edge_index, num_nodes, batch, num_graphs):
    """Glue: dense normalized adjacency (mean aggregation, src->dst flow)
    and global_mean_pool matrix."""
    src, dst = edge_index[0], edge_index[1]
    adj = jnp.zeros((num_nodes, num_nodes), jnp.float32).at[dst, src].add(1.0)
    deg = adj.sum(axis=1, keepdims=True)
    adj_norm = jnp.where(deg > 0, adj / jnp.maximum(deg, 1.0), 0.0)

    onehot = (batch[None, :] == jnp.arange(num_graphs)[:, None]).astype(jnp.float32)
    counts = onehot.sum(axis=1, keepdims=True)
    pool_mat = onehot / jnp.maximum(counts, 1.0)
    return adj_norm, pool_mat


def _reference(x, adj_norm, pool_mat, p):
    """Plain f32 JAX reference for correctness check."""
    h = x
    for (wl, wr, b) in ((p["wl1"], p["wr1"], p["b1"]),
                        (p["wl2"], p["wr2"], p["b2"]),
                        (p["wl3"], p["wr3"], p["b3"])):
        h = jnp.maximum((adj_norm @ h) @ wl + h @ wr + b, 0.0)
    return pool_mat @ h @ p["wfc"] + p["bfc"]


if __name__ == "__main__":
    IN_CHANNELS = 16
    HIDDEN_CHANNELS = 32
    OUT_CHANNELS = 8
    NODES_PER_GRAPH = 16
    NUM_GRAPHS = 2
    N = NODES_PER_GRAPH * NUM_GRAPHS

    key = jax.random.PRNGKey(0)
    k_x, k_param = jax.random.split(key)

    # Node features.
    x = jax.random.normal(k_x, (N, IN_CHANNELS), jnp.float32)

    # Deterministic edge_index: bidirectional ring + a skip edge per graph.
    srcs, dsts = [], []
    for g in range(NUM_GRAPHS):
        off = g * NODES_PER_GRAPH
        for i in range(NODES_PER_GRAPH):
            a = off + i
            bnode = off + (i + 1) % NODES_PER_GRAPH
            cnode = off + (i + 3) % NODES_PER_GRAPH
            srcs += [a, bnode, a]
            dsts += [bnode, a, cnode]
    edge_index = jnp.array([srcs, dsts], dtype=jnp.int32)
    # edge_attr exists in the data object but is unused by the forward pass.

    batch = jnp.repeat(jnp.arange(NUM_GRAPHS, dtype=jnp.int32), NODES_PER_GRAPH)

    adj_norm, pool_mat = _build_dense_graph(edge_index, N, batch, NUM_GRAPHS)
    params = _init_params(k_param, IN_CHANNELS, HIDDEN_CHANNELS, OUT_CHANNELS)

    out = graphsage_classifier(x, adj_norm, pool_mat, params)
    out = jax.block_until_ready(out)

    ref = _reference(x, adj_norm, pool_mat, params)
    assert out.shape == (NUM_GRAPHS, OUT_CHANNELS)
    # Loose tolerance: adjacency/activations go through bf16 on the A@H path
    # (f32 accumulation), so expect ~1e-2-level relative deviation from the
    # pure-f32 reference.
    assert jnp.allclose(out, ref, atol=5e-2, rtol=5e-2), (out, ref)

    print("KERNEL_OK")
</pallas_src>

<mosaic_0001>
module attributes {stable_mosaic.version = 11 : i64} {
  func.func @_sage_classifier_kernel(%arg0: i32, %arg1: memref<32x16xf32, #tpu.memory_space<vmem>>, %arg2: memref<32x32xbf16, #tpu.memory_space<vmem>>, %arg3: memref<2x32xf32, #tpu.memory_space<vmem>>, %arg4: memref<32x32xf32, #tpu.memory_space<vmem>>, %arg5: memref<2x64x32xf32, #tpu.memory_space<vmem>>, %arg6: memref<3x1x32xf32, #tpu.memory_space<vmem>>, %arg7: memref<32x128xf32, #tpu.memory_space<vmem>>, %arg8: memref<1x128xf32, #tpu.memory_space<vmem>>, %arg9: memref<2x128xf32, #tpu.memory_space<vmem>>) attributes {dimension_semantics = [#tpu.dimension_semantics<arbitrary>], iteration_bounds = array<i64: 1>, scalar_prefetch = 0 : i64, scratch_operands = 0 : i64, tpu.core_type = #tpu.core_type<tc>, window_params = [{pipeline_mode = #tpu.pipeline_mode<synchronous>, transform_indices = @transform_0, window_bounds = array<i64: 32, 16>}, {pipeline_mode = #tpu.pipeline_mode<synchronous>, transform_indices = @transform_1, window_bounds = array<i64: 32, 32>}, {pipeline_mode = #tpu.pipeline_mode<synchronous>, transform_indices = @transform_2, window_bounds = array<i64: 2, 32>}, {pipeline_mode = #tpu.pipeline_mode<synchronous>, transform_indices = @transform_3, window_bounds = array<i64: 32, 32>}, {pipeline_mode = #tpu.pipeline_mode<synchronous>, transform_indices = @transform_4, window_bounds = array<i64: 2, 64, 32>}, {pipeline_mode = #tpu.pipeline_mode<synchronous>, transform_indices = @transform_5, window_bounds = array<i64: 3, 1, 32>}, {pipeline_mode = #tpu.pipeline_mode<synchronous>, transform_indices = @transform_6, window_bounds = array<i64: 32, 128>}, {pipeline_mode = #tpu.pipeline_mode<synchronous>, transform_indices = @transform_7, window_bounds = array<i64: 1, 128>}, {pipeline_mode = #tpu.pipeline_mode<synchronous>, transform_indices = @transform_8, window_bounds = array<i64: 2, 128>}]} {
    %c0 = arith.constant 0 : index
    %c0_0 = arith.constant 0 : index
    %0 = vector.load %arg2[%c0, %c0_0] : memref<32x32xbf16, #tpu.memory_space<vmem>>, vector<32x32xbf16>
    %c0_1 = arith.constant 0 : index
    %c0_2 = arith.constant 0 : index
    %1 = vector.load %arg1[%c0_1, %c0_2] : memref<32x16xf32, #tpu.memory_space<vmem>>, vector<32x16xf32>
    %c0_3 = arith.constant 0 : index
    %c0_4 = arith.constant 0 : index
    %2 = vector.load %arg4[%c0_3, %c0_4] : memref<32x32xf32, #tpu.memory_space<vmem>>, vector<32x32xf32>
    %c0_5 = arith.constant 0 : index
    %c0_6 = arith.constant 0 : index
    %c0_7 = arith.constant 0 : index
    %3 = vector.load %arg6[%c0_5, %c0_6, %c0_7] : memref<3x1x32xf32, #tpu.memory_space<vmem>>, vector<1x1x32xf32>
    %4 = vector.shape_cast %3 : vector<1x1x32xf32> to vector<1x32xf32>
    %5 = arith.truncf %1 : vector<32x16xf32> to vector<32x16xbf16>
    %cst = arith.constant dense<0.000000e+00> : vector<32x16xf32>
    %6 = tpu.matmul %0, %5, %cst {dimension_numbers = #tpu.dot_dimension_numbers<[1], [0], [0], [1], [0, 0, 1, 1], [], []>} : vector<32x32xbf16>, vector<32x16xbf16>, vector<32x16xf32> -> vector<32x16xf32>
    %7 = tpu.concatenate %6, %1 in 1 : vector<32x16xf32>, vector<32x16xf32> -> vector<32x32xf32>
    %cst_8 = arith.constant dense<0.000000e+00> : vector<32x32xf32>
    %8 = tpu.matmul %7, %2, %cst_8 {dimension_numbers = #tpu.dot_dimension_numbers<[1], [0], [0], [1], [0, 0, 1, 1], [], []>} : vector<32x32xf32>, vector<32x32xf32>, vector<32x32xf32> -> vector<32x32xf32>
    %9 = vector.broadcast %4 : vector<1x32xf32> to vector<32x32xf32>
    %10 = arith.addf %8, %9 : vector<32x32xf32>
    %cst_9 = arith.constant 0.000000e+00 : f32
    %11 = vector.broadcast %cst_9 : f32 to vector<32x32xf32>
    %12 = arith.maximumf %10, %11 : vector<32x32xf32>
    %c0_10 = arith.constant 0 : index
    %c0_11 = arith.constant 0 : index
    %c0_12 = arith.constant 0 : index
    %13 = vector.load %arg5[%c0_10, %c0_11, %c0_12] : memref<2x64x32xf32, #tpu.memory_space<vmem>>, vector<1x64x32xf32>
    %14 = vector.shape_cast %13 : vector<1x64x32xf32> to vector<64x32xf32>
    %c1 = arith.constant 1 : index
    %c0_13 = arith.constant 0 : index
    %c0_14 = arith.constant 0 : index
    %15 = vector.load %arg6[%c1, %c0_13, %c0_14] : memref<3x1x32xf32, #tpu.memory_space<vmem>>, vector<1x1x32xf32>
    %16 = vector.shape_cast %15 : vector<1x1x32xf32> to vector<1x32xf32>
    %17 = arith.truncf %12 : vector<32x32xf32> to vector<32x32xbf16>
    %cst_15 = arith.constant dense<0.000000e+00> : vector<32x32xf32>
    %18 = tpu.matmul %0, %17, %cst_15 {dimension_numbers = #tpu.dot_dimension_numbers<[1], [0], [0], [1], [0, 0, 1, 1], [], []>} : vector<32x32xbf16>, vector<32x32xbf16>, vector<32x32xf32> -> vector<32x32xf32>
    %19 = tpu.concatenate %18, %12 in 1 : vector<32x32xf32>, vector<32x32xf32> -> vector<32x64xf32>
    %cst_16 = arith.constant dense<0.000000e+00> : vector<32x32xf32>
    %20 = tpu.matmul %19, %14, %cst_16 {dimension_numbers = #tpu.dot_dimension_numbers<[1], [0], [0], [1], [0, 0, 1, 1], [], []>} : vector<32x64xf32>, vector<64x32xf32>, vector<32x32xf32> -> vector<32x32xf32>
    %21 = vector.broadcast %16 : vector<1x32xf32> to vector<32x32xf32>
    %22 = arith.addf %20, %21 : vector<32x32xf32>
    %cst_17 = arith.constant 0.000000e+00 : f32
    %23 = vector.broadcast %cst_17 : f32 to vector<32x32xf32>
    %24 = arith.maximumf %22, %23 : vector<32x32xf32>
    %c1_18 = arith.constant 1 : index
    %c0_19 = arith.constant 0 : index
    %c0_20 = arith.constant 0 : index
    %25 = vector.load %arg5[%c1_18, %c0_19, %c0_20] : memref<2x64x32xf32, #tpu.memory_space<vmem>>, vector<1x64x32xf32>
    %26 = vector.shape_cast %25 : vector<1x64x32xf32> to vector<64x32xf32>
    %c2 = arith.constant 2 : index
    %c0_21 = arith.constant 0 : index
    %c0_22 = arith.constant 0 : index
    %27 = vector.load %arg6[%c2, %c0_21, %c0_22] : memref<3x1x32xf32, #tpu.memory_space<vmem>>, vector<1x1x32xf32>
    %28 = vector.shape_cast %27 : vector<1x1x32xf32> to vector<1x32xf32>
    %29 = arith.truncf %24 : vector<32x32xf32> to vector<32x32xbf16>
    %cst_23 = arith.constant dense<0.000000e+00> : vector<32x32xf32>
    %30 = tpu.matmul %0, %29, %cst_23 {dimension_numbers = #tpu.dot_dimension_numbers<[1], [0], [0], [1], [0, 0, 1, 1], [], []>} : vector<32x32xbf16>, vector<32x32xbf16>, vector<32x32xf32> -> vector<32x32xf32>
    %31 = tpu.concatenate %30, %24 in 1 : vector<32x32xf32>, vector<32x32xf32> -> vector<32x64xf32>
    %cst_24 = arith.constant dense<0.000000e+00> : vector<32x32xf32>
    %32 = tpu.matmul %31, %26, %cst_24 {dimension_numbers = #tpu.dot_dimension_numbers<[1], [0], [0], [1], [0, 0, 1, 1], [], []>} : vector<32x64xf32>, vector<64x32xf32>, vector<32x32xf32> -> vector<32x32xf32>
    %33 = vector.broadcast %28 : vector<1x32xf32> to vector<32x32xf32>
    %34 = arith.addf %32, %33 : vector<32x32xf32>
    %cst_25 = arith.constant 0.000000e+00 : f32
    %35 = vector.broadcast %cst_25 : f32 to vector<32x32xf32>
    %36 = arith.maximumf %34, %35 : vector<32x32xf32>
    %c0_26 = arith.constant 0 : index
    %c0_27 = arith.constant 0 : index
    %37 = vector.load %arg3[%c0_26, %c0_27] : memref<2x32xf32, #tpu.memory_space<vmem>>, vector<2x32xf32>
    %cst_28 = arith.constant dense<0.000000e+00> : vector<2x32xf32>
    %38 = tpu.matmul %37, %36, %cst_28 {dimension_numbers = #tpu.dot_dimension_numbers<[1], [0], [0], [1], [0, 0, 1, 1], [], []>} : vector<2x32xf32>, vector<32x32xf32>, vector<2x32xf32> -> vector<2x32xf32>
    %c0_29 = arith.constant 0 : index
    %c0_30 = arith.constant 0 : index
    %39 = vector.load %arg7[%c0_29, %c0_30] : memref<32x128xf32, #tpu.memory_space<vmem>>, vector<32x128xf32>
    %cst_31 = arith.constant dense<0.000000e+00> : vector<2x128xf32>
    %40 = tpu.matmul %38, %39, %cst_31 {dimension_numbers = #tpu.dot_dimension_numbers<[1], [0], [0], [1], [0, 0, 1, 1], [], []>} : vector<2x32xf32>, vector<32x128xf32>, vector<2x128xf32> -> vector<2x128xf32>
    %c0_32 = arith.constant 0 : index
    %c0_33 = arith.constant 0 : index
    %41 = vector.load %arg8[%c0_32, %c0_33] : memref<1x128xf32, #tpu.memory_space<vmem>>, vector<1x128xf32>
    %42 = vector.broadcast %41 : vector<1x128xf32> to vector<2x128xf32>
    %43 = arith.addf %40, %42 : vector<2x128xf32>
    %c0_34 = arith.constant 0 : index
    %c0_35 = arith.constant 0 : index
    %44 = vector.load %arg9[%c0_34, %c0_35] : memref<2x128xf32, #tpu.memory_space<vmem>>, vector<2x128xf32>
    tpu.vector_store %arg9[%c0_34, %c0_35], %43 {strides = array<i32>} : memref<2x128xf32, #tpu.memory_space<vmem>>, vector<2x128xf32>,
    return
  }
  func.func @transform_0(%arg0: i32) -> (i32, i32) {
    %c0_i32 = arith.constant 0 : i32
    %c0_i32_0 = arith.constant 0 : i32
    %c0_i32_1 = arith.constant 0 : i32
    return %c0_i32, %c0_i32_0 : i32, i32
  }
  func.func @transform_1(%arg0: i32) -> (i32, i32) {
    %c0_i32 = arith.constant 0 : i32
    %c0_i32_0 = arith.constant 0 : i32
    %c0_i32_1 = arith.constant 0 : i32
    return %c0_i32, %c0_i32_0 : i32, i32
  }
  func.func @transform_2(%arg0: i32) -> (i32, i32) {
    %c0_i32 = arith.constant 0 : i32
    %c0_i32_0 = arith.constant 0 : i32
    %c0_i32_1 = arith.constant 0 : i32
    return %c0_i32, %c0_i32_0 : i32, i32
  }
  func.func @transform_3(%arg0: i32) -> (i32, i32) {
    %c0_i32 = arith.constant 0 : i32
    %c0_i32_0 = arith.constant 0 : i32
    %c0_i32_1 = arith.constant 0 : i32
    return %c0_i32, %c0_i32_0 : i32, i32
  }
  func.func @transform_4(%arg0: i32) -> (i32, i32, i32) {
    %c0_i32 = arith.constant 0 : i32
    %c0_i32_0 = arith.constant 0 : i32
    %c0_i32_1 = arith.constant 0 : i32
    %c0_i32_2 = arith.constant 0 : i32
    return %c0_i32, %c0_i32_0, %c0_i32_1 : i32, i32, i32
  }
  func.func @transform_5(%arg0: i32) -> (i32, i32, i32) {
    %c0_i32 = arith.constant 0 : i32
    %c0_i32_0 = arith.constant 0 : i32
    %c0_i32_1 = arith.constant 0 : i32
    %c0_i32_2 = arith.constant 0 : i32
    return %c0_i32, %c0_i32_0, %c0_i32_1 : i32, i32, i32
  }
  func.func @transform_6(%arg0: i32) -> (i32, i32) {
    %c0_i32 = arith.constant 0 : i32
    %c0_i32_0 = arith.constant 0 : i32
    %c0_i32_1 = arith.constant 0 : i32
    return %c0_i32, %c0_i32_0 : i32, i32
  }
  func.func @transform_7(%arg0: i32) -> (i32, i32) {
    %c0_i32 = arith.constant 0 : i32
    %c0_i32_0 = arith.constant 0 : i32
    %c0_i32_1 = arith.constant 0 : i32
    return %c0_i32, %c0_i32_0 : i32, i32
  }
  func.func @transform_8(%arg0: i32) -> (i32, i32) {
    %c0_i32 = arith.constant 0 : i32
    %c0_i32_0 = arith.constant 0 : i32
    %c0_i32_1 = arith.constant 0 : i32
    return %c0_i32, %c0_i32_0 : i32, i32
  }
}

</mosaic_0001>

<llo_original>
// kernel: tpu_custom_call.1
$region0: #{tpu_custom_call.1}
  #allocation0 [shape = 'u32[]', space=smem, size = 0x4, offset = 0x4, fixed_abs, tag = 'smem constant byte address 0x4 - core index']
  #allocation1 [shape = 'u32[144,128]{1,0:T(1,128)}', space=vmem, size = 0x12000, scoped, tag = 'internal scratch']
  %s0 = inlined_call_operand.vmem [shape: f32[32,16], index: 0, kind: input, shape index: {}]
  %s1 = inlined_call_operand.vmem [shape: bf16[32,32], index: 1, kind: input, shape index: {}]
  %s2 = inlined_call_operand.vmem [shape: f32[2,32], index: 2, kind: input, shape index: {}]
  %s3 = inlined_call_operand.vmem [shape: f32[32,32], index: 3, kind: input, shape index: {}]
  %s4 = inlined_call_operand.vmem [shape: f32[2,64,32], index: 4, kind: input, shape index: {}]
  %s5 = inlined_call_operand.vmem [shape: f32[3,1,32], index: 5, kind: input, shape index: {}]
  %s6 = inlined_call_operand.vmem [shape: f32[32,128], index: 6, kind: input, shape index: {}]
  %s7 = inlined_call_operand.vmem [shape: f32[1,128], index: 7, kind: input, shape index: {}]
  %s8 = inlined_call_operand.hbm [shape: f32[2,128], index: 8, kind: output, shape index: {}]
  %s9 = sld [smem:[#allocation0]]
  $region42: #{tpu_custom_call.1} parent=0
    _
  %s11 = ssub.s32 1, %s9
  %s12 = scalar_select 0, %s11, %s9
  $region1: #{tpu_custom_call.1} parent=0
    #allocation2 [shape = 'u8[1024]{0}', space=vmem, size = 0x400, scoped, tag = 'output window, operand 0, single buffered']
    #allocation3 [shape = 's32[1]{0}', space=sflag, size = 0x4, scoped, tag = 'scoped memory for tpu_custom_call.1']
    %13 = vsyncpa [#allocation3], 0
    // Predicated region
    $region2: #{tpu_custom_call.1} parent=1 // pred_check
      _
    $region3: #{tpu_custom_call.1} parent=1 // pred_check_branch
      %15 = sbr.rel (0) target = $region5
    $region4: #{tpu_custom_call.1} parent=1 // pred_region
      _
    $region5: #{tpu_custom_call.1} parent=1 // pred_fallthru
      _
    // Predicated region
    $region6: #{tpu_custom_call.1} parent=1 // pred_check
      _
    $region7: #{tpu_custom_call.1} parent=1 // pred_check_branch
      %17 = sbr.rel (0) target = $region9
    $region8: #{tpu_custom_call.1} parent=1 // pred_region
      _
    $region9: #{tpu_custom_call.1} parent=1 // pred_fallthru
      _
    // Predicated region
    $region10: #{tpu_custom_call.1} parent=1 // pred_check
      _
    $region11: #{tpu_custom_call.1} parent=1 // pred_check_branch
      %19 = sbr.rel (0) target = $region13
    $region12: #{tpu_custom_call.1} parent=1 // pred_region
      _
    $region13: #{tpu_custom_call.1} parent=1 // pred_fallthru
      _
    // Predicated region
    $region14: #{tpu_custom_call.1} parent=1 // pred_check
      _
    $region15: #{tpu_custom_call.1} parent=1 // pred_check_branch
      %21 = sbr.rel (0) target = $region17
    $region16: #{tpu_custom_call.1} parent=1 // pred_region
      _
    $region17: #{tpu_custom_call.1} parent=1 // pred_fallthru
      _
    // Predicated region
    $region18: #{tpu_custom_call.1} parent=1 // pred_check
      _
    $region19: #{tpu_custom_call.1} parent=1 // pred_check_branch
      %23 = sbr.rel (0) target = $region21
    $region20: #{tpu_custom_call.1} parent=1 // pred_region
      _
    $region21: #{tpu_custom_call.1} parent=1 // pred_fallthru
      _
    // Predicated region
    $region22: #{tpu_custom_call.1} parent=1 // pred_check
      _
    $region23: #{tpu_custom_call.1} parent=1 // pred_check_branch
      %25 = sbr.rel (0) target = $region25
    $region24: #{tpu_custom_call.1} parent=1 // pred_region
      _
    $region25: #{tpu_custom_call.1} parent=1 // pred_fallthru
      _
    // Predicated region
    $region26: #{tpu_custom_call.1} parent=1 // pred_check
      _
    $region27: #{tpu_custom_call.1} parent=1 // pred_check_branch
      %27 = sbr.rel (0) target = $region29
    $region28: #{tpu_custom_call.1} parent=1 // pred_region
      _
    $region29: #{tpu_custom_call.1} parent=1 // pred_fallthru
      _
    // Predicated region
    $region30: #{tpu_custom_call.1} parent=1 // pred_check
      _
    $region31: #{tpu_custom_call.1} parent=1 // pred_check_branch
      %29 = sbr.rel (0) target = $region33
    $region32: #{tpu_custom_call.1} parent=1 // pred_region
      _
    $region33: #{tpu_custom_call.1} parent=1 // pred_fallthru
      _
    %v31 = vld [vmem:[%s1] sm:$0xf]
    %v32 = vld [vmem:[%s1 + $0x4] sm:$0xf]
    %v33 = vld [vmem:[%s1 + $0x8] sm:$0xf]
    %v34 = vld [vmem:[%s1 + $0xc] sm:$0xf]
    %v35 = vld [vmem:[%s0] sm:$0xff]
    %v36 = vld [vmem:[%s0 + $0x8] sm:$0xff]
    %v37 = vld [vmem:[%s0 + $0x10] sm:$0xff]
    %v38 = vld [vmem:[%s0 + $0x18] sm:$0xff]
    %v39 = vld [vmem:[%s3] sm:$0xff]
    %v40 = vld [vmem:[%s3 + $0x8] sm:$0xff]
    %v41 = vld [vmem:[%s3 + $0x10] sm:$0xff]
    %v42 = vld [vmem:[%s3 + $0x18] sm:$0xff]
    %v43 = vld [vmem:[%s5] sm:$0x1]
    %v44 = vpack.c.bf16 %v36, %v35
    %v45 = vpack.c.bf16 %v38, %v37
    %v50 = vunpack.c.l.b16 %v31
    %v51 = vunpack.c.l.b16 %v32
    %v52 = vunpack.c.l.b16 %v33
    %v53 = vunpack.c.l.b16 %v34
    %v54 = vpack.c.b16 %v51, %v50
    %v55 = vpack.c.b16 %v53, %v52
    %vm56 = vcmask 261120
    %v58 = vsel %vm56, %v54, 0
    %v61 = vsel %vm56, %v55, 0
    %63 = vmatprep.subr.bf16.mxu0 0
    %64 = vmatpush1.bf16.msra.mxu0 %v44
    %65 = vmatprep.subr.bf16.mxu0 0
    %66 = vmatpush1.bf16.msra.mxu0 %v45
    %67 = vmatprep.subr.bf16.mxu0 0
    %68 = vmatpush1.bf16.msra.mxu0 0
    %69 = vmatprep.subr.bf16.mxu0 0
    %70 = vmatpush1.bf16.msra.mxu0 0
    %71 = vmatprep.subr.bf16.mxu0 0
    %72 = vmatpush1.bf16.msra.mxu0 0
    %73 = vmatprep.subr.bf16.mxu0 0
    %74 = vmatpush1.bf16.msra.mxu0 0
    %75 = vmatprep.subr.bf16.mxu0 0
    %76 = vmatpush1.bf16.msra.mxu0 0
    %77 = vmatprep.subr.bf16.mxu0 0
    %78 = vmatpush1.bf16.msra.mxu0 0
    %79 = vmatprep.subr.bf16.mxu0 0
    %80 = vmatpush1.bf16.msra.mxu0 0
    %81 = vmatprep.subr.bf16.mxu0 0
    %82 = vmatpush1.bf16.msra.mxu0 0
    %83 = vmatprep.subr.bf16.mxu0 0
    %84 = vmatpush1.bf16.msra.mxu0 0
    %85 = vmatprep.subr.bf16.mxu0 0
    %86 = vmatpush1.bf16.msra.mxu0 0
    %87 = vmatprep.subr.bf16.mxu0 0
    %88 = vmatpush1.bf16.msra.mxu0 0
    %89 = vmatprep.subr.bf16.mxu0 0
    %90 = vmatpush1.bf16.msra.mxu0 0
    %91 = vmatprep.subr.bf16.mxu0 0
    %92 = vmatpush1.bf16.msra.mxu0 0
    %93 = vmatprep.subr.bf16.mxu0 0
    %94 = vmatpush1.bf16.msra.mxu0 0
    %95 = vmatprep.mubr.bf16.mxu0 0
    %96 = vmatmul.mubr.bf16.gmra.mrb[0].mxu0 %v58
    %v97 = vpop.f32.mrb[0].mxu0
    %v98 = vadd.f32 0.0, %v97
    %v99 = vpop.f32.mrb[0].mxu0
    %v100 = vpop.f32.mrb[0].mxu0
    %v101 = vadd.f32 0.0, %v100
    %v102 = vpop.f32.mrb[0].mxu0
    %103 = vmatprep.mubr.bf16.mxu0 0
    %104 = vmatmul.mubr.bf16.gmra.mrb[0].mxu0 %v61
    %v105 = vpop.f32.mrb[0].mxu0
    %v106 = vadd.f32 0.0, %v105
    %v107 = vpop.f32.mrb[0].mxu0
    %v108 = vpop.f32.mrb[0].mxu0
    %v109 = vadd.f32 0.0, %v108
    %v110 = vpop.f32.mrb[0].mxu0
    %111 = vdwg.mxu0
    %116 = vrot.lane.b32.xlu0 %v35, 16
    %v117 = vpop.permute.xlu0 %116
    %118 = vrot.lane.b32.xlu0 %v36, 16
    %v119 = vpop.permute.xlu0 %118
    %120 = vrot.lane.b32.xlu0 %v37, 16
    %v121 = vpop.permute.xlu0 %120
    %122 = vrot.lane.b32.xlu0 %v38, 16
    %v123 = vpop.permute.xlu0 %122
    %vm128 = vcmask 130048
    %v129 = vsel %vm128, %v98, %v117
    %v130 = vsel %vm128, %v101, %v119
    %v131 = vsel %vm128, %v106, %v121
    %v132 = vsel %vm128, %v109, %v123
    %v134 = vlaneseq
    %v135 = vshrl.u32 %v134, 7
    %v136 = vsub.s32 0, %v135
    %v137 = vrot.slane %v43, %v136
    %v140 = vsel %vm56, %v129, 0
    %v143 = vsel %vm56, %v130, 0
    %v146 = vsel %vm56, %v131, 0
    %v149 = vsel %vm56, %v132, 0
    %151 = vmatprep.subr.mxu0 0.0
    %152 = vmatpush1.msra.mxu0 %v39
    %153 = vmatprep.subr.mxu0 0.0
    %154 = vmatpush1.msra.mxu0 %v40
    %155 = vmatprep.subr.mxu0 0.0
    %156 = vmatpush1.msra.mxu0 %v41
    %157 = vmatprep.subr.mxu0 0.0
    %158 = vmatpush1.msra.mxu0 %v42
    %159 = vmatprep.subr.mxu0 0.0
    %160 = vmatpush1.msra.mxu0 0.0
    %161 = vmatprep.subr.mxu0 0.0
    %162 = vmatpush1.msra.mxu0 0.0
    %163 = vmatprep.subr.mxu0 0.0
    %164 = vmatpush1.msra.mxu0 0.0
    %165 = vmatprep.subr.mxu0 0.0
    %166 = vmatpush1.msra.mxu0 0.0
    %167 = vmatprep.subr.mxu0 0.0
    %168 = vmatpush1.msra.mxu0 0.0
    %169 = vmatprep.subr.mxu0 0.0
    %170 = vmatpush1.msra.mxu0 0.0
    %171 = vmatprep.subr.mxu0 0.0
    %172 = vmatpush1.msra.mxu0 0.0
    %173 = vmatprep.subr.mxu0 0.0
    %174 = vmatpush1.msra.mxu0 0.0
    %175 = vmatprep.subr.mxu0 0.0
    %176 = vmatpush1.msra.mxu0 0.0
    %177 = vmatprep.subr.mxu0 0.0
    %178 = vmatpush1.msra.mxu0 0.0
    %179 = vmatprep.subr.mxu0 0.0
    %180 = vmatpush1.msra.mxu0 0.0
    %181 = vmatprep.subr.mxu0 0.0
    %182 = vmatpush1.msra.mxu0 0.0
    %183 = vmatprep.subr.mxu0 0.0
    %184 = vmatpush1.msra.mxu0 0.0
    %185 = vmatprep.subr.mxu0 0.0
    %186 = vmatpush1.msra.mxu0 0.0
    %187 = vmatprep.subr.mxu0 0.0
    %188 = vmatpush1.msra.mxu0 0.0
    %189 = vmatprep.subr.mxu0 0.0
    %190 = vmatpush1.msra.mxu0 0.0
    %191 = vmatprep.subr.mxu0 0.0
    %192 = vmatpush1.msra.mxu0 0.0
    %193 = vmatprep.subr.mxu0 0.0
    %194 = vmatpush1.msra.mxu0 0.0
    %195 = vmatprep.subr.mxu0 0.0
    %196 = vmatpush1.msra.mxu0 0.0
    %197 = vmatprep.subr.mxu0 0.0
    %198 = vmatpush1.msra.mxu0 0.0
    %199 = vmatprep.subr.mxu0 0.0
    %200 = vmatpush1.msra.mxu0 0.0
    %201 = vmatprep.subr.mxu0 0.0
    %202 = vmatpush1.msra.mxu0 0.0
    %203 = vmatprep.subr.mxu0 0.0
    %204 = vmatpush1.msra.mxu0 0.0
    %205 = vmatprep.subr.mxu0 0.0
    %206 = vmatpush1.msra.mxu0 0.0
    %207 = vmatprep.subr.mxu0 0.0
    %208 = vmatpush1.msra.mxu0 0.0
    %209 = vmatprep.subr.mxu0 0.0
    %210 = vmatpush1.msra.mxu0 0.0
    %211 = vmatprep.subr.mxu0 0.0
    %212 = vmatpush1.msra.mxu0 0.0
    %213 = vmatprep.subr.mxu0 0.0
    %214 = vmatpush1.msra.mxu0 0.0
    %215 = vmatprep.mubr.f32.mxu0 0.0
    %216 = vmatmul.mubr.f32.gmra.mrb[0].mxu0 %v140
    %v217 = vpop.f32.mrb[0].mxu0
    %v218 = vadd.f32 %v137, %v217
    %v219 = vpop.f32.mrb[0].mxu0
    %220 = vmatprep.mubr.f32.mxu0 0.0
    %221 = vmatmul.mubr.f32.gmra.mrb[0].mxu0 %v143
    %v222 = vpop.f32.mrb[0].mxu0
    %v223 = vadd.f32 %v137, %v222
    %v224 = vpop.f32.mrb[0].mxu0
    %225 = vmatprep.mubr.f32.mxu0 0.0
    %226 = vmatmul.mubr.f32.gmra.mrb[0].mxu0 %v146
    %v227 = vpop.f32.mrb[0].mxu0
    %v228 = vadd.f32 %v137, %v227
    %v229 = vpop.f32.mrb[0].mxu0
    %230 = vmatprep.mubr.f32.mxu0 0.0
    %231 = vmatmul.mubr.f32.gmra.mrb[0].mxu0 %v149
    %v232 = vpop.f32.mrb[0].mxu0
    %v233 = vadd.f32 %v137, %v232
    %v234 = vpop.f32.mrb[0].mxu0
    %235 = vdwg.mxu0
    %v236 = vmax.f32 %v218, 0.0
    %v237 = vmax.f32 %v223, 0.0
    %v238 = vmax.f32 %v228, 0.0
    %v239 = vmax.f32 %v233, 0.0
    %v240 = vld [vmem:[%s4] sm:$0xff]
    %v241 = vld [vmem:[%s4 + $0x8] sm:$0xff]
    %v242 = vld [vmem:[%s4 + $0x10] sm:$0xff]
    %v243 = vld [vmem:[%s4 + $0x18] sm:$0xff]
    %v244 = vld [vmem:[%s4 + $0x20] sm:$0xff]
    %v245 = vld [vmem:[%s4 + $0x28] sm:$0xff]
    %v246 = vld [vmem:[%s4 + $0x30] sm:$0xff]
    %v247 = vld [vmem:[%s4 + $0x38] sm:$0xff]
    %s248 = scalar_lea.vmem %s5, 1
    %v249 = vld [vmem:[%s248] sm:$0x1]
    %v250 = vpack.c.bf16 %v237, %v236
    %v251 = vpack.c.bf16 %v239, %v238
    %252 = vmatprep.subr.bf16.mxu0 0
    %253 = vmatpush1.bf16.msra.mxu0 %v250
    %254 = vmatprep.subr.bf16.mxu0 0
    %255 = vmatpush1.bf16.msra.mxu0 %v251
    %256 = vmatprep.subr.bf16.mxu0 0
    %257 = vmatpush1.bf16.msra.mxu0 0
    %258 = vmatprep.subr.bf16.mxu0 0
    %259 = vmatpush1.bf16.msra.mxu0 0
    %260 = vmatprep.subr.bf16.mxu0 0
    %261 = vmatpush1.bf16.msra.mxu0 0
    %262 = vmatprep.subr.bf16.mxu0 0
    %263 = vmatpush1.bf16.msra.mxu0 0
    %264 = vmatprep.subr.bf16.mxu0 0
    %265 = vmatpush1.bf16.msra.mxu0 0
    %266 = vmatprep.subr.bf16.mxu0 0
    %267 = vmatpush1.bf16.msra.mxu0 0
    %268 = vmatprep.subr.bf16.mxu0 0
    %269 = vmatpush1.bf16.msra.mxu0 0
    %270 = vmatprep.subr.bf16.mxu0 0
    %271 = vmatpush1.bf16.msra.mxu0 0
    %272 = vmatprep.subr.bf16.mxu0 0
    %273 = vmatpush1.bf16.msra.mxu0 0
    %274 = vmatprep.subr.bf16.mxu0 0
    %275 = vmatpush1.bf16.msra.mxu0 0
    %276 = vmatprep.subr.bf16.mxu0 0
    %277 = vmatpush1.bf16.msra.mxu0 0
    %278 = vmatprep.subr.bf16.mxu0 0
    %279 = vmatpush1.bf16.msra.mxu0 0
    %280 = vmatprep.subr.bf16.mxu0 0
    %281 = vmatpush1.bf16.msra.mxu0 0
    %282 = vmatprep.subr.bf16.mxu0 0
    %283 = vmatpush1.bf16.msra.mxu0 0
    %284 = vmatprep.mubr.bf16.mxu0 0
    %285 = vmatmul.mubr.bf16.gmra.mrb[0].mxu0 %v58
    %v286 = vpop.f32.mrb[0].mxu0
    %v287 = vadd.f32 0.0, %v286
    %v288 = vpop.f32.mrb[0].mxu0
    %v289 = vpop.f32.mrb[0].mxu0
    %v290 = vadd.f32 0.0, %v289
    %v291 = vpop.f32.mrb[0].mxu0
    %292 = vmatprep.mubr.bf16.mxu0 0
    %293 = vmatmul.mubr.bf16.gmra.mrb[0].mxu0 %v61
    %v294 = vpop.f32.mrb[0].mxu0
    %v295 = vadd.f32 0.0, %v294
    %v296 = vpop.f32.mrb[0].mxu0
    %v297 = vpop.f32.mrb[0].mxu0
    %v298 = vadd.f32 0.0, %v297
    %v299 = vpop.f32.mrb[0].mxu0
    %300 = vdwg.mxu0
    %305 = vrot.lane.b32.xlu0 %v236, 32
    %v306 = vpop.permute.xlu0 %305
    %307 = vrot.lane.b32.xlu0 %v237, 32
    %v308 = vpop.permute.xlu0 %307
    %309 = vrot.lane.b32.xlu0 %v238, 32
    %v310 = vpop.permute.xlu0 %309
    %311 = vrot.lane.b32.xlu0 %v239, 32
    %v312 = vpop.permute.xlu0 %311
    %v317 = vsel %vm56, %v287, %v306
    %v318 = vsel %vm56, %v290, %v308
    %v319 = vsel %vm56, %v295, %v310
    %v320 = vsel %vm56, %v298, %v312
    %v322 = vlaneseq
    %v323 = vshrl.u32 %v322, 7
    %v324 = vsub.s32 0, %v323
    %v325 = vrot.slane %v249, %v324
    %vm327 = vcmask 523264
    %v329 = vsel %vm327, %v317, 0
    %v332 = vsel %vm327, %v318, 0
    %v335 = vsel %vm327, %v319, 0
    %v338 = vsel %vm327, %v320, 0
    %340 = vmatprep.subr.mxu0 0.0
    %341 = vmatpush1.msra.mxu0 %v240
    %342 = vmatprep.subr.mxu0 0.0
    %343 = vmatpush1.msra.mxu0 %v241
    %344 = vmatprep.subr.mxu0 0.0
    %345 = vmatpush1.msra.mxu0 %v242
    %346 = vmatprep.subr.mxu0 0.0
    %347 = vmatpush1.msra.mxu0 %v243
    %348 = vmatprep.subr.mxu0 0.0
    %349 = vmatpush1.msra.mxu0 %v244
    %350 = vmatprep.subr.mxu0 0.0
    %351 = vmatpush1.msra.mxu0 %v245
    %352 = vmatprep.subr.mxu0 0.0
    %353 = vmatpush1.msra.mxu0 %v246
    %354 = vmatprep.subr.mxu0 0.0
    %355 = vmatpush1.msra.mxu0 %v247
    %356 = vmatprep.subr.mxu0 0.0
    %357 = vmatpush1.msra.mxu0 0.0
    %358 = vmatprep.subr.mxu0 0.0
    %359 = vmatpush1.msra.mxu0 0.0
    %360 = vmatprep.subr.mxu0 0.0
    %361 = vmatpush1.msra.mxu0 0.0
    %362 = vmatprep.subr.mxu0 0.0
    %363 = vmatpush1.msra.mxu0 0.0
    %364 = vmatprep.subr.mxu0 0.0
    %365 = vmatpush1.msra.mxu0 0.0
    %366 = vmatprep.subr.mxu0 0.0
    %367 = vmatpush1.msra.mxu0 0.0
    %368 = vmatprep.subr.mxu0 0.0
    %369 = vmatpush1.msra.mxu0 0.0
    %370 = vmatprep.subr.mxu0 0.0
    %371 = vmatpush1.msra.mxu0 0.0
    %372 = vmatprep.subr.mxu0 0.0
    %373 = vmatpush1.msra.mxu0 0.0
    %374 = vmatprep.subr.mxu0 0.0
    %375 = vmatpush1.msra.mxu0 0.0
    %376 = vmatprep.subr.mxu0 0.0
    %377 = vmatpush1.msra.mxu0 0.0
    %378 = vmatprep.subr.mxu0 0.0
    %379 = vmatpush1.msra.mxu0 0.0
    %380 = vmatprep.subr.mxu0 0.0
    %381 = vmatpush1.msra.mxu0 0.0
    %382 = vmatprep.subr.mxu0 0.0
    %383 = vmatpush1.msra.mxu0 0.0
    %384 = vmatprep.subr.mxu0 0.0
    %385 = vmatpush1.msra.mxu0 0.0
    %386 = vmatprep.subr.mxu0 0.0
    %387 = vmatpush1.msra.mxu0 0.0
    %388 = vmatprep.subr.mxu0 0.0
    %389 = vmatpush1.msra.mxu0 0.0
    %390 = vmatprep.subr.mxu0 0.0
    %391 = vmatpush1.msra.mxu0 0.0
    %392 = vmatprep.subr.mxu0 0.0
    %393 = vmatpush1.msra.mxu0 0.0
    %394 = vmatprep.subr.mxu0 0.0
    %395 = vmatpush1.msra.mxu0 0.0
    %396 = vmatprep.subr.mxu0 0.0
    %397 = vmatpush1.msra.mxu0 0.0
    %398 = vmatprep.subr.mxu0 0.0
    %399 = vmatpush1.msra.mxu0 0.0
    %400 = vmatprep.subr.mxu0 0.0
    %401 = vmatpush1.msra.mxu0 0.0
    %402 = vmatprep.subr.mxu0 0.0
    %403 = vmatpush1.msra.mxu0 0.0
    %404 = vmatprep.mubr.f32.mxu0 0.0
    %405 = vmatmul.mubr.f32.gmra.mrb[0].mxu0 %v329
    %v406 = vpop.f32.mrb[0].mxu0
    %v407 = vadd.f32 %v325, %v406
    %v408 = vpop.f32.mrb[0].mxu0
    %409 = vmatprep.mubr.f32.mxu0 0.0
    %410 = vmatmul.mubr.f32.gmra.mrb[0].mxu0 %v332
    %v411 = vpop.f32.mrb[0].mxu0
    %v412 = vadd.f32 %v325, %v411
    %v413 = vpop.f32.mrb[0].mxu0
    %414 = vmatprep.mubr.f32.mxu0 0.0
    %415 = vmatmul.mubr.f32.gmra.mrb[0].mxu0 %v335
    %v416 = vpop.f32.mrb[0].mxu0
    %v417 = vadd.f32 %v325, %v416
    %v418 = vpop.f32.mrb[0].mxu0
    %419 = vmatprep.mubr.f32.mxu0 0.0
    %420 = vmatmul.mubr.f32.gmra.mrb[0].mxu0 %v338
    %v421 = vpop.f32.mrb[0].mxu0
    %v422 = vadd.f32 %v325, %v421
    %v423 = vpop.f32.mrb[0].mxu0
    %424 = vdwg.mxu0
    %v425 = vmax.f32 %v407, 0.0
    %v426 = vmax.f32 %v412, 0.0
    %v427 = vmax.f32 %v417, 0.0
    %v428 = vmax.f32 %v422, 0.0
    %s429 = scalar_lea.vmem %s4, 64
    %v430 = vld [vmem:[%s429] sm:$0xff]
    %v431 = vld [vmem:[%s429 + $0x8] sm:$0xff]
    %v432 = vld [vmem:[%s429 + $0x10] sm:$0xff]
    %v433 = vld [vmem:[%s429 + $0x18] sm:$0xff]
    %v434 = vld [vmem:[%s429 + $0x20] sm:$0xff]
    %v435 = vld [vmem:[%s429 + $0x28] sm:$0xff]
    %v436 = vld [vmem:[%s429 + $0x30] sm:$0xff]
    %v437 = vld [vmem:[%s429 + $0x38] sm:$0xff]
    %s438 = scalar_lea.vmem %s5, 2
    %v439 = vld [vmem:[%s438] sm:$0x1]
    %v440 = vpack.c.bf16 %v426, %v425
    %v441 = vpack.c.bf16 %v428, %v427
    %442 = vmatprep.subr.bf16.mxu0 0
    %443 = vmatpush1.bf16.msra.mxu0 %v440
    %444 = vmatprep.subr.bf16.mxu0 0
    %445 = vmatpush1.bf16.msra.mxu0 %v441
    %446 = vmatprep.subr.bf16.mxu0 0
    %447 = vmatpush1.bf16.msra.mxu0 0
    %448 = vmatprep.subr.bf16.mxu0 0
    %449 = vmatpush1.bf16.msra.mxu0 0
    %450 = vmatprep.subr.bf16.mxu0 0
    %451 = vmatpush1.bf16.msra.mxu0 0
    %452 = vmatprep.subr.bf16.mxu0 0
    %453 = vmatpush1.bf16.msra.mxu0 0
    %454 = vmatprep.subr.bf16.mxu0 0
    %455 = vmatpush1.bf16.msra.mxu0 0
    %456 = vmatprep.subr.bf16.mxu0 0
    %457 = vmatpush1.bf16.msra.mxu0 0
    %458 = vmatprep.subr.bf16.mxu0 0
    %459 = vmatpush1.bf16.msra.mxu0 0
    %460 = vmatprep.subr.bf16.mxu0 0
    %461 = vmatpush1.bf16.msra.mxu0 0
    %462 = vmatprep.subr.bf16.mxu0 0
    %463 = vmatpush1.bf16.msra.mxu0 0
    %464 = vmatprep.subr.bf16.mxu0 0
    %465 = vmatpush1.bf16.msra.mxu0 0
    %466 = vmatprep.subr.bf16.mxu0 0
    %467 = vmatpush1.bf16.msra.mxu0 0
    %468 = vmatprep.subr.bf16.mxu0 0
    %469 = vmatpush1.bf16.msra.mxu0 0
    %470 = vmatprep.subr.bf16.mxu0 0
    %471 = vmatpush1.bf16.msra.mxu0 0
    %472 = vmatprep.subr.bf16.mxu0 0
    %473 = vmatpush1.bf16.msra.mxu0 0
    %474 = vmatprep.mubr.bf16.mxu0 0
    %475 = vmatmul.mubr.bf16.gmra.mrb[0].mxu0 %v58
    %v476 = vpop.f32.mrb[0].mxu0
    %v477 = vadd.f32 0.0, %v476
    %v478 = vpop.f32.mrb[0].mxu0
    %v479 = vpop.f32.mrb[0].mxu0
    %v480 = vadd.f32 0.0, %v479
    %v481 = vpop.f32.mrb[0].mxu0
    %482 = vmatprep.mubr.bf16.mxu0 0
    %483 = vmatmul.mubr.bf16.gmra.mrb[0].mxu0 %v61
    %v484 = vpop.f32.mrb[0].mxu0
    %v485 = vadd.f32 0.0, %v484
    %v486 = vpop.f32.mrb[0].mxu0
    %v487 = vpop.f32.mrb[0].mxu0
    %v488 = vadd.f32 0.0, %v487
    %v489 = vpop.f32.mrb[0].mxu0
    %490 = vdwg.mxu0
    %495 = vrot.lane.b32.xlu0 %v425, 32
    %v496 = vpop.permute.xlu0 %495
    %497 = vrot.lane.b32.xlu0 %v426, 32
    %v498 = vpop.permute.xlu0 %497
    %499 = vrot.lane.b32.xlu0 %v427, 32
    %v500 = vpop.permute.xlu0 %499
    %501 = vrot.lane.b32.xlu0 %v428, 32
    %v502 = vpop.permute.xlu0 %501
    %v507 = vsel %vm56, %v477, %v496
    %v508 = vsel %vm56, %v480, %v498
    %v509 = vsel %vm56, %v485, %v500
    %v510 = vsel %vm56, %v488, %v502
    %v512 = vlaneseq
    %v513 = vshrl.u32 %v512, 7
    %v514 = vsub.s32 0, %v513
    %v515 = vrot.slane %v439, %v514
    %v518 = vsel %vm327, %v507, 0
    %v521 = vsel %vm327, %v508, 0
    %v524 = vsel %vm327, %v509, 0
    %v527 = vsel %vm327, %v510, 0
    %529 = vmatprep.subr.mxu0 0.0
    %530 = vmatpush1.msra.mxu0 %v430
    %531 = vmatprep.subr.mxu0 0.0
    %532 = vmatpush1.msra.mxu0 %v431
    %533 = vmatprep.subr.mxu0 0.0
    %534 = vmatpush1.msra.mxu0 %v432
    %535 = vmatprep.subr.mxu0 0.0
    %536 = vmatpush1.msra.mxu0 %v433
    %537 = vmatprep.subr.mxu0 0.0
    %538 = vmatpush1.msra.mxu0 %v434
    %539 = vmatprep.subr.mxu0 0.0
    %540 = vmatpush1.msra.mxu0 %v435
    %541 = vmatprep.subr.mxu0 0.0
    %542 = vmatpush1.msra.mxu0 %v436
    %543 = vmatprep.subr.mxu0 0.0
    %544 = vmatpush1.msra.mxu0 %v437
    %545 = vmatprep.subr.mxu0 0.0
    %546 = vmatpush1.msra.mxu0 0.0
    %547 = vmatprep.subr.mxu0 0.0
    %548 = vmatpush1.msra.mxu0 0.0
    %549 = vmatprep.subr.mxu0 0.0
    %550 = vmatpush1.msra.mxu0 0.0
    %551 = vmatprep.subr.mxu0 0.0
    %552 = vmatpush1.msra.mxu0 0.0
    %553 = vmatprep.subr.mxu0 0.0
    %554 = vmatpush1.msra.mxu0 0.0
    %555 = vmatprep.subr.mxu0 0.0
    %556 = vmatpush1.msra.mxu0 0.0
    %557 = vmatprep.subr.mxu0 0.0
    %558 = vmatpush1.msra.mxu0 0.0
    %559 = vmatprep.subr.mxu0 0.0
    %560 = vmatpush1.msra.mxu0 0.0
    %561 = vmatprep.subr.mxu0 0.0
    %562 = vmatpush1.msra.mxu0 0.0
    %563 = vmatprep.subr.mxu0 0.0
    %564 = vmatpush1.msra.mxu0 0.0
    %565 = vmatprep.subr.mxu0 0.0
    %566 = vmatpush1.msra.mxu0 0.0
    %567 = vmatprep.subr.mxu0 0.0
    %568 = vmatpush1.msra.mxu0 0.0
    %569 = vmatprep.subr.mxu0 0.0
    %570 = vmatpush1.msra.mxu0 0.0
    %571 = vmatprep.subr.mxu0 0.0
    %572 = vmatpush1.msra.mxu0 0.0
    %573 = vmatprep.subr.mxu0 0.0
    %574 = vmatpush1.msra.mxu0 0.0
    %575 = vmatprep.subr.mxu0 0.0
    %576 = vmatpush1.msra.mxu0 0.0
    %577 = vmatprep.subr.mxu0 0.0
    %578 = vmatpush1.msra.mxu0 0.0
    %579 = vmatprep.subr.mxu0 0.0
    %580 = vmatpush1.msra.mxu0 0.0
    %581 = vmatprep.subr.mxu0 0.0
    %582 = vmatpush1.msra.mxu0 0.0
    %583 = vmatprep.subr.mxu0 0.0
    %584 = vmatpush1.msra.mxu0 0.0
    %585 = vmatprep.subr.mxu0 0.0
    %586 = vmatpush1.msra.mxu0 0.0
    %587 = vmatprep.subr.mxu0 0.0
    %588 = vmatpush1.msra.mxu0 0.0
    %589 = vmatprep.subr.mxu0 0.0
    %590 = vmatpush1.msra.mxu0 0.0
    %591 = vmatprep.subr.mxu0 0.0
    %592 = vmatpush1.msra.mxu0 0.0
    %593 = vmatprep.mubr.f32.mxu0 0.0
    %594 = vmatmul.mubr.f32.gmra.mrb[0].mxu0 %v518
    %v595 = vpop.f32.mrb[0].mxu0
    %v596 = vadd.f32 %v515, %v595
    %v597 = vpop.f32.mrb[0].mxu0
    %598 = vmatprep.mubr.f32.mxu0 0.0
    %599 = vmatmul.mubr.f32.gmra.mrb[0].mxu0 %v521
    %v600 = vpop.f32.mrb[0].mxu0
    %v601 = vadd.f32 %v515, %v600
    %v602 = vpop.f32.mrb[0].mxu0
    %603 = vmatprep.mubr.f32.mxu0 0.0
    %604 = vmatmul.mubr.f32.gmra.mrb[0].mxu0 %v524
    %v605 = vpop.f32.mrb[0].mxu0
    %v606 = vadd.f32 %v515, %v605
    %v607 = vpop.f32.mrb[0].mxu0
    %608 = vmatprep.mubr.f32.mxu0 0.0
    %609 = vmatmul.mubr.f32.gmra.mrb[0].mxu0 %v527
    %v610 = vpop.f32.mrb[0].mxu0
    %v611 = vadd.f32 %v515, %v610
    %v612 = vpop.f32.mrb[0].mxu0
    %613 = vdwg.mxu0
    %v614 = vmax.f32 %v596, 0.0
    %v615 = vmax.f32 %v601, 0.0
    %v616 = vmax.f32 %v606, 0.0
    %v617 = vmax.f32 %v611, 0.0
    %v618 = vld [vmem:[%s2] sm:$0x3]
    %v620 = vsel %vm56, %v618, 0
    %622 = vmatprep.subr.mxu0 0.0
    %623 = vmatpush1.msra.mxu0 %v614
    %624 = vmatprep.subr.mxu0 0.0
    %625 = vmatpush1.msra.mxu0 %v615
    %626 = vmatprep.subr.mxu0 0.0
    %627 = vmatpush1.msra.mxu0 %v616
    %628 = vmatprep.subr.mxu0 0.0
    %629 = vmatpush1.msra.mxu0 %v617
    %630 = vmatprep.subr.mxu0 0.0
    %631 = vmatpush1.msra.mxu0 0.0
    %632 = vmatprep.subr.mxu0 0.0
    %633 = vmatpush1.msra.mxu0 0.0
    %634 = vmatprep.subr.mxu0 0.0
    %635 = vmatpush1.msra.mxu0 0.0
    %636 = vmatprep.subr.mxu0 0.0
    %637 = vmatpush1.msra.mxu0 0.0
    %638 = vmatprep.subr.mxu0 0.0
    %639 = vmatpush1.msra.mxu0 0.0
    %640 = vmatprep.subr.mxu0 0.0
    %641 = vmatpush1.msra.mxu0 0.0
    %642 = vmatprep.subr.mxu0 0.0
    %643 = vmatpush1.msra.mxu0 0.0
    %644 = vmatprep.subr.mxu0 0.0
    %645 = vmatpush1.msra.mxu0 0.0
    %646 = vmatprep.subr.mxu0 0.0
    %647 = vmatpush1.msra.mxu0 0.0
    %648 = vmatprep.subr.mxu0 0.0
    %649 = vmatpush1.msra.mxu0 0.0
    %650 = vmatprep.subr.mxu0 0.0
    %651 = vmatpush1.msra.mxu0 0.0
    %652 = vmatprep.subr.mxu0 0.0
    %653 = vmatpush1.msra.mxu0 0.0
    %654 = vmatprep.subr.mxu0 0.0
    %655 = vmatpush1.msra.mxu0 0.0
    %656 = vmatprep.subr.mxu0 0.0
    %657 = vmatpush1.msra.mxu0 0.0
    %658 = vmatprep.subr.mxu0 0.0
    %659 = vmatpush1.msra.mxu0 0.0
    %660 = vmatprep.subr.mxu0 0.0
    %661 = vmatpush1.msra.mxu0 0.0
    %662 = vmatprep.subr.mxu0 0.0
    %663 = vmatpush1.msra.mxu0 0.0
    %664 = vmatprep.subr.mxu0 0.0
    %665 = vmatpush1.msra.mxu0 0.0
    %666 = vmatprep.subr.mxu0 0.0
    %667 = vmatpush1.msra.mxu0 0.0
    %668 = vmatprep.subr.mxu0 0.0
    %669 = vmatpush1.msra.mxu0 0.0
    %670 = vmatprep.subr.mxu0 0.0
    %671 = vmatpush1.msra.mxu0 0.0
    %672 = vmatprep.subr.mxu0 0.0
    %673 = vmatpush1.msra.mxu0 0.0
    %674 = vmatprep.subr.mxu0 0.0
    %675 = vmatpush1.msra.mxu0 0.0
    %676 = vmatprep.subr.mxu0 0.0
    %677 = vmatpush1.msra.mxu0 0.0
    %678 = vmatprep.subr.mxu0 0.0
    %679 = vmatpush1.msra.mxu0 0.0
    %680 = vmatprep.subr.mxu0 0.0
    %681 = vmatpush1.msra.mxu0 0.0
    %682 = vmatprep.subr.mxu0 0.0
    %683 = vmatpush1.msra.mxu0 0.0
    %684 = vmatprep.subr.mxu0 0.0
    %685 = vmatpush1.msra.mxu0 0.0
    %686 = vmatprep.mubr.f32.mxu0 0.0
    %687 = vmatmul.mubr.f32.gmra.mrb[0].mxu0 %v620
    %v688 = vpop.f32.mrb[0].mxu0
    %v689 = vadd.f32 0.0, %v688
    %v690 = vpop.f32.mrb[0].mxu0
    %691 = vdwg.mxu0
    %v692 = vld [vmem:[%s6] sm:$0xff]
    %v693 = vld [vmem:[%s6 + $0x8] sm:$0xff]
    %v694 = vld [vmem:[%s6 + $0x10] sm:$0xff]
    %v695 = vld [vmem:[%s6 + $0x18] sm:$0xff]
    %v696 = vld [vmem:[%s7] sm:$0x1]
    %v698 = vlaneseq
    %v699 = vshrl.u32 %v698, 7
    %v700 = vsub.s32 0, %v699
    %v701 = vrot.slane %v696, %v700
    %v704 = vsel %vm56, %v689, 0
    %706 = vmatprep.subr.mxu0 0.0
    %707 = vmatpush1.msra.mxu0 %v692
    %708 = vmatprep.subr.mxu0 0.0
    %709 = vmatpush1.msra.mxu0 %v693
    %710 = vmatprep.subr.mxu0 0.0
    %711 = vmatpush1.msra.mxu0 %v694
    %712 = vmatprep.subr.mxu0 0.0
    %713 = vmatpush1.msra.mxu0 %v695
    %714 = vmatprep.subr.mxu0 0.0
    %715 = vmatpush1.msra.mxu0 0.0
    %716 = vmatprep.subr.mxu0 0.0
    %717 = vmatpush1.msra.mxu0 0.0
    %718 = vmatprep.subr.mxu0 0.0
    %719 = vmatpush1.msra.mxu0 0.0
    %720 = vmatprep.subr.mxu0 0.0
    %721 = vmatpush1.msra.mxu0 0.0
    %722 = vmatprep.subr.mxu0 0.0
    %723 = vmatpush1.msra.mxu0 0.0
    %724 = vmatprep.subr.mxu0 0.0
    %725 = vmatpush1.msra.mxu0 0.0
    %726 = vmatprep.subr.mxu0 0.0
    %727 = vmatpush1.msra.mxu0 0.0
    %728 = vmatprep.subr.mxu0 0.0
    %729 = vmatpush1.msra.mxu0 0.0
    %730 = vmatprep.subr.mxu0 0.0
    %731 = vmatpush1.msra.mxu0 0.0
    %732 = vmatprep.subr.mxu0 0.0
    %733 = vmatpush1.msra.mxu0 0.0
    %734 = vmatprep.subr.mxu0 0.0
    %735 = vmatpush1.msra.mxu0 0.0
    %736 = vmatprep.subr.mxu0 0.0
    %737 = vmatpush1.msra.mxu0 0.0
    %738 = vmatprep.subr.mxu0 0.0
    %739 = vmatpush1.msra.mxu0 0.0
    %740 = vmatprep.subr.mxu0 0.0
    %741 = vmatpush1.msra.mxu0 0.0
    %742 = vmatprep.subr.mxu0 0.0
    %743 = vmatpush1.msra.mxu0 0.0
    %744 = vmatprep.subr.mxu0 0.0
    %745 = vmatpush1.msra.mxu0 0.0
    %746 = vmatprep.subr.mxu0 0.0
    %747 = vmatpush1.msra.mxu0 0.0
    %748 = vmatprep.subr.mxu0 0.0
    %749 = vmatpush1.msra.mxu0 0.0
    %750 = vmatprep.subr.mxu0 0.0
    %751 = vmatpush1.msra.mxu0 0.0
    %752 = vmatprep.subr.mxu0 0.0
    %753 = vmatpush1.msra.mxu0 0.0
    %754 = vmatprep.subr.mxu0 0.0
    %755 = vmatpush1.msra.mxu0 0.0
    %756 = vmatprep.subr.mxu0 0.0
    %757 = vmatpush1.msra.mxu0 0.0
    %758 = vmatprep.subr.mxu0 0.0
    %759 = vmatpush1.msra.mxu0 0.0
    %760 = vmatprep.subr.mxu0 0.0
    %761 = vmatpush1.msra.mxu0 0.0
    %762 = vmatprep.subr.mxu0 0.0
    %763 = vmatpush1.msra.mxu0 0.0
    %764 = vmatprep.subr.mxu0 0.0
    %765 = vmatpush1.msra.mxu0 0.0
    %766 = vmatprep.subr.mxu0 0.0
    %767 = vmatpush1.msra.mxu0 0.0
    %768 = vmatprep.subr.mxu0 0.0
    %769 = vmatpush1.msra.mxu0 0.0
    %770 = vmatprep.mubr.f32.mxu0 0.0
    %771 = vmatmul.mubr.f32.gmra.mrb[0].mxu0 %v704
    %v772 = vpop.f32.mrb[0].mxu0
    %v773 = vadd.f32 %v701, %v772
    %v774 = vpop.f32.mrb[0].mxu0
    %775 = vdwg.mxu0
    %776 = vst [vmem:[#allocation2] sm:$0x3] %v773
    // Predicated region
    $region34: #{tpu_custom_call.1} parent=1 // pred_check
      _
    $region35: #{tpu_custom_call.1} parent=1 // pred_check_branch
      %778 = sbr.rel (0) target = $region37
    $region36: #{tpu_custom_call.1} parent=1 // pred_region
      %s780 = ssub.s32 32, 32
      %781 = vsyncadd [#allocation3], %s780
      %s783 = sshll.u32 [#allocation2], 4
      %s784 = int_to_ptr.vmem [resolvable:$true] %s783
      %786 = dma.vmem_to_hbm [thread:$0]  %s784, 32, %s8, [#allocation3]
    $region37: #{tpu_custom_call.1} parent=1 // pred_fallthru
      _
    // Predicated region
    $region38: #{tpu_custom_call.1} parent=1 // pred_check
      _
    $region39: #{tpu_custom_call.1} parent=1 // pred_check_branch
      %788 = sbr.rel (0) target = $region41
    $region40: #{tpu_custom_call.1} parent=1 // pred_region
      %789 = dma.done [#allocation3], 32
    $region41: #{tpu_custom_call.1} parent=1 // pred_fallthru
      _
    %790 = vsyncpa [#allocation3], 1

</llo_original>
